<compile_context>
chip_gen: v7x
topology: tpu7x:2x2x1
jax: 0.10.0
libtpu: 0.0.40
codegen_flags: <defaults>
</compile_context>

<pallas_src>
import math

import jax
import jax.numpy as jnp
from jax import lax
from jax.experimental import pallas as pl
from jax.experimental.pallas import tpu as pltpu


_MASK_VALUE = -1e30  # finite "−inf": keeps exp()/max() NaN-free (scores stay f32)


def _pick_tile(dim, target, align):
    """Largest tile <= target that divides dim and is a multiple of align.
    Falls back to the full dimension (always a legal block shape)."""
    if dim <= target:
        return dim
    t = (target // align) * align
    while t >= align:
        if dim % t == 0:
            return t
        t -= align
    return dim


# ----------------------------- Tiled linear -----------------------------

def _linear_kernel(x_ref, w_ref, b_ref, o_ref, acc_ref):
    k = pl.program_id(2)

    @pl.when(k == 0)
    def _init():
        acc_ref[...] = jnp.zeros_like(acc_ref)

    acc_ref[...] += jnp.dot(x_ref[...], w_ref[...],
                            preferred_element_type=jnp.float32)

    @pl.when(k == pl.num_programs(2) - 1)
    def _finalize():
        o_ref[...] = (acc_ref[...] + b_ref[...].astype(jnp.float32)).astype(o_ref.dtype)


def linear(x2d, w, b, *, tm=512, tn=512, tk=1024):
    """y = x2d @ w + b with a pipelined, K-accumulating Pallas matmul."""
    M, K = x2d.shape
    Kw, N = w.shape
    assert K == Kw
    tm = _pick_tile(M, tm, 8)
    tn = _pick_tile(N, tn, 128)
    tk = _pick_tile(K, tk, 128)
    grid = (M // tm, N // tn, K // tk)
    itemsize = x2d.dtype.itemsize

    return pl.pallas_call(
        _linear_kernel,
        out_shape=jax.ShapeDtypeStruct((M, N), x2d.dtype),
        grid=grid,
        in_specs=[
            pl.BlockSpec((tm, tk), lambda i, j, k: (i, k)),
            pl.BlockSpec((tk, tn), lambda i, j, k: (k, j)),
            pl.BlockSpec((1, tn), lambda i, j, k: (0, j)),
        ],
        out_specs=pl.BlockSpec((tm, tn), lambda i, j, k: (i, j)),
        scratch_shapes=[pltpu.VMEM((tm, tn), jnp.float32)],
        compiler_params=pltpu.CompilerParams(
            dimension_semantics=("parallel", "parallel", "arbitrary"),
            vmem_limit_bytes=48 * 1024 * 1024),   # <= ~48 MiB: safe on v7x (64 MiB phys)
        cost_estimate=pl.CostEstimate(
            flops=2 * M * N * K,
            transcendentals=0,
            bytes_accessed=(M * K + K * N + M * N) * itemsize),
    )(x2d, w, b.reshape(1, N))


# ------------------------ Flash causal attention -------------------------

def _flash_attn_kernel(qi_tab_ref, ki_tab_ref, q_ref, k_ref, v_ref, o_ref,
                       m_ref, l_ref, acc_ref):
    # Blocks: q/k/v/o are (1, blk, hd); scratch m/l are (blk, 1) f32, acc is
    # (blk, hd) f32.  Grid = (B*H, n_pairs) where n_pairs enumerates only the
    # lower-triangle (qi, ki) tile pairs (kv innermost within each qi run).
    s_idx = pl.program_id(1)
    qi = qi_tab_ref[s_idx]
    ki = ki_tab_ref[s_idx]
    blk = q_ref.shape[1]

    @pl.when(ki == 0)
    def _init():
        m_ref[...] = jnp.full(m_ref.shape, _MASK_VALUE, m_ref.dtype)
        l_ref[...] = jnp.zeros_like(l_ref)
        acc_ref[...] = jnp.zeros_like(acc_ref)

    q = q_ref[0]                      # (blk, hd)  — 1/sqrt(hd) already folded into W_q
    k = k_ref[0]                      # (blk, hd)
    v = v_ref[0]                      # (blk, hd)

    # q·kᵀ contracting hd directly — no materialized transpose of k.
    s = lax.dot_general(q, k, (((1,), (1,)), ((), ())),
                        preferred_element_type=jnp.float32)           # (blk, blk)

    # Single update path: causal mask applied unconditionally (all-true on
    # interior tiles; the compare+select is cheap VPU filler under the MXU).
    row = qi * blk + lax.broadcasted_iota(jnp.int32, (blk, blk), 0)
    col = ki * blk + lax.broadcasted_iota(jnp.int32, (blk, blk), 1)
    s = jnp.where(col <= row, s, _MASK_VALUE)

    m_prev = m_ref[...]                                               # (blk, 1)
    m_new = jnp.maximum(m_prev, jnp.max(s, axis=-1, keepdims=True))
    alpha = jnp.exp(m_prev - m_new)
    p = jnp.exp(s - m_new)                                            # (blk, blk) f32
    l_ref[...] = alpha * l_ref[...] + jnp.sum(p, axis=-1, keepdims=True)
    acc_ref[...] = alpha * acc_ref[...] + jnp.dot(
        p.astype(v.dtype), v, preferred_element_type=jnp.float32)
    m_ref[...] = m_new

    @pl.when(ki == qi)    # diagonal block = last kv step for this qi: finalize
    def _finalize():
        # Deferred softmax normalization: one (blk, hd) multiply with an EUP
        # reciprocal instead of dividing the (blk, blk) scores every step.
        inv = pl.reciprocal(l_ref[...], approx=True)                  # (blk, 1)
        o_ref[0] = (acc_ref[...] * inv).astype(o_ref.dtype)           # dense (blk, hd) slab


def flash_attention(q, k, v, *, block_t=None):
    """Causal multi-head attention.  q, k, v, out: (B*H, T, hd); scale pre-folded."""
    BH, T, hd = q.shape
    blk = _pick_tile(T, 256, 8) if block_t is None else block_t
    assert T % blk == 0
    n_t = T // blk
    itemsize = q.dtype.itemsize

    # Triangular schedule: only the lower-triangle (qi, ki<=qi) tile pairs are
    # iterated, kv innermost within each qi run.  No dead upper-triangle steps.
    qi_list, ki_list = [], []
    for qi in range(n_t):
        for ki in range(qi + 1):
            qi_list.append(qi)
            ki_list.append(ki)
    n_pairs = len(qi_list)
    qi_tab = jnp.asarray(qi_list, dtype=jnp.int32)
    ki_tab = jnp.asarray(ki_list, dtype=jnp.int32)

    def q_map(bh, s, qi_t, ki_t):
        return (bh, qi_t[s], 0)

    def kv_map(bh, s, qi_t, ki_t):
        return (bh, ki_t[s], 0)

    block = (1, blk, hd)
    return pl.pallas_call(
        _flash_attn_kernel,
        out_shape=jax.ShapeDtypeStruct((BH, T, hd), q.dtype),
        grid_spec=pltpu.PrefetchScalarGridSpec(
            num_scalar_prefetch=2,
            grid=(BH, n_pairs),
            in_specs=[pl.BlockSpec(block, q_map),
                      pl.BlockSpec(block, kv_map),
                      pl.BlockSpec(block, kv_map)],
            out_specs=pl.BlockSpec(block, q_map),
            scratch_shapes=[
                pltpu.VMEM((blk, 1), jnp.float32),    # running max
                pltpu.VMEM((blk, 1), jnp.float32),    # running denominator
                pltpu.VMEM((blk, hd), jnp.float32),   # running output accumulator
            ]),
        compiler_params=pltpu.CompilerParams(
            dimension_semantics=("parallel", "arbitrary")),
        cost_estimate=pl.CostEstimate(
            flops=2 * BH * T * T * hd,                # ~causal half of 4*BH*T*T*hd
            transcendentals=BH * T * T // 2,
            bytes_accessed=4 * BH * T * hd * itemsize),
    )(qi_tab, ki_tab, q, k, v)


# ------------------------------ Module glue ------------------------------

def init_params(key, n_embd, bias=True, dtype=jnp.float32):
    """Mirror nn.Linear's U(-1/sqrt(fan_in), 1/sqrt(fan_in)); weights stored (in, out)."""
    k1, k2, k3, k4 = jax.random.split(key, 4)
    bound = 1.0 / math.sqrt(n_embd)
    return {
        "w_attn": jax.random.uniform(k1, (n_embd, 3 * n_embd), dtype, -bound, bound),
        "b_attn": (jax.random.uniform(k2, (3 * n_embd,), dtype, -bound, bound)
                   if bias else jnp.zeros((3 * n_embd,), dtype)),
        "w_proj": jax.random.uniform(k3, (n_embd, n_embd), dtype, -bound, bound),
        "b_proj": (jax.random.uniform(k4, (n_embd,), dtype, -bound, bound)
                   if bias else jnp.zeros((n_embd,), dtype)),
    }


def causal_self_attention(x, params, n_head, *, attn_block=None):
    B, T, C = x.shape
    assert C % n_head == 0
    hd = C // n_head
    x2d = x.reshape(B * T, C)

    # Fold 1/sqrt(hd) into the Q projection weights/bias (trace-time, O(C*C)),
    # removing the per-kv-step Q re-scale inside the flash kernel.
    scale = 1.0 / math.sqrt(hd)
    w_attn = params["w_attn"]
    b_attn = params["b_attn"]
    w_attn = jnp.concatenate([w_attn[:, :C] * scale, w_attn[:, C:]], axis=1)
    b_attn = jnp.concatenate([b_attn[:C] * scale, b_attn[C:]])

    # Single fused QKV projection: x streamed from HBM once, wide lane-dense
    # (B*T, 3C) output tile.
    qkv = linear(x2d, w_attn, b_attn)                       # (B*T, 3C)
    qkv = qkv.reshape(B, T, 3, n_head, hd)
    q = qkv[:, :, 0].transpose(0, 2, 1, 3).reshape(B * n_head, T, hd)
    k = qkv[:, :, 1].transpose(0, 2, 1, 3).reshape(B * n_head, T, hd)
    v = qkv[:, :, 2].transpose(0, 2, 1, 3).reshape(B * n_head, T, hd)

    y = flash_attention(q, k, v, block_t=attn_block)        # (B*H, T, hd)
    y2d = y.reshape(B, n_head, T, hd).transpose(0, 2, 1, 3).reshape(B * T, C)

    # Output projection.  resid_dropout is identity (eval / dropout = 0).
    out = linear(y2d, params["w_proj"], params["b_proj"])
    return out.reshape(B, T, C)


# --------------------------- Pure-JAX reference ---------------------------

def reference(x, params, n_head):
    B, T, C = x.shape
    hd = C // n_head
    qkv = x @ params["w_attn"] + params["b_attn"]
    q, k, v = jnp.split(qkv, 3, axis=2)

    def to_heads(t):
        return t.reshape(B, T, n_head, hd).transpose(0, 2, 1, 3)

    q, k, v = to_heads(q), to_heads(k), to_heads(v)
    att = (q @ jnp.swapaxes(k, -2, -1)) / math.sqrt(hd)
    mask = jnp.tril(jnp.ones((T, T), bool))
    att = jnp.where(mask[None, None], att, -jnp.inf)
    att = jax.nn.softmax(att, axis=-1)
    y = att @ v
    y = y.transpose(0, 2, 1, 3).reshape(B, T, C)
    return y @ params["w_proj"] + params["b_proj"]


# --------------------------------- Main -----------------------------------

if __name__ == "__main__":
    # Small, module-consistent shapes.  attn_block=8 with T=16 gives a 2x2 tile
    # triangle (3 schedule steps) so the init / interior / diagonal-finalize
    # paths of the flattened causal grid all execute.
    B, T, C, n_head = 2, 16, 32, 4

    key = jax.random.PRNGKey(0)
    kx, kp = jax.random.split(key)
    x = jax.random.normal(kx, (B, T, C), jnp.float32)
    params = init_params(kp, C, bias=True)

    out = jax.block_until_ready(causal_self_attention(x, params, n_head, attn_block=8))
    ref = jax.block_until_ready(reference(x, params, n_head))

    assert out.shape == (B, T, C)
    max_err = float(jnp.max(jnp.abs(out - ref)))
    # Tolerance allows for the EUP approximate reciprocal used in the deferred
    # softmax normalization (otherwise the math is f32-accumulated).
    assert jnp.allclose(out, ref, atol=5e-3, rtol=5e-3), \
        f"mismatch vs reference (max abs err {max_err})"
    print("KERNEL_OK")
</pallas_src>

<mosaic_0001>
module attributes {stable_mosaic.version = 11 : i64} {
  func.func @_linear_kernel(%arg0: i32, %arg1: i32, %arg2: i32, %arg3: memref<32x32xf32, #tpu.memory_space<vmem>>, %arg4: memref<32x96xf32, #tpu.memory_space<vmem>>, %arg5: memref<1x96xf32, #tpu.memory_space<vmem>>, %arg6: memref<32x96xf32, #tpu.memory_space<vmem>>, %arg7: memref<32x96xf32, #tpu.memory_space<vmem>>) attributes {dimension_semantics = [#tpu.dimension_semantics<parallel>, #tpu.dimension_semantics<parallel>, #tpu.dimension_semantics<arbitrary>], iteration_bounds = array<i64: 1, 1, 1>, scalar_prefetch = 0 : i64, scratch_operands = 1 : i64, tpu.core_type = #tpu.core_type<tc>, window_params = [{transform_indices = @transform_0, window_bounds = array<i64: 32, 32>}, {transform_indices = @transform_1, window_bounds = array<i64: 32, 96>}, {transform_indices = @transform_2, window_bounds = array<i64: 1, 96>}, {transform_indices = @transform_3, window_bounds = array<i64: 32, 96>}]} {
    %c0_i32 = arith.constant 0 : i32
    %0 = arith.cmpi eq, %arg2, %c0_i32 : i32
    %1 = arith.extui %0 : i1 to i32
    %c0_i32_0 = arith.constant 0 : i32
    %2 = arith.cmpi ne, %1, %c0_i32_0 : i32
    scf.if %2 {
      %cst_10 = arith.constant 0.000000e+00 : f32
      %12 = vector.broadcast %cst_10 : f32 to vector<32x96xf32>
      %c0_11 = arith.constant 0 : index
      %c0_12 = arith.constant 0 : index
      %13 = vector.load %arg7[%c0_11, %c0_12] : memref<32x96xf32, #tpu.memory_space<vmem>>, vector<32x96xf32>
      tpu.vector_store %arg7[%c0_11, %c0_12], %12 {strides = array<i32>} : memref<32x96xf32, #tpu.memory_space<vmem>>, vector<32x96xf32>,
    } else {
    }
    %c0 = arith.constant 0 : index
    %c0_1 = arith.constant 0 : index
    %3 = vector.load %arg7[%c0, %c0_1] : memref<32x96xf32, #tpu.memory_space<vmem>>, vector<32x96xf32>
    %c0_2 = arith.constant 0 : index
    %c0_3 = arith.constant 0 : index
    %4 = vector.load %arg3[%c0_2, %c0_3] : memref<32x32xf32, #tpu.memory_space<vmem>>, vector<32x32xf32>
    %c0_4 = arith.constant 0 : index
    %c0_5 = arith.constant 0 : index
    %5 = vector.load %arg4[%c0_4, %c0_5] : memref<32x96xf32, #tpu.memory_space<vmem>>, vector<32x96xf32>
    %cst = arith.constant dense<0.000000e+00> : vector<32x96xf32>
    %6 = tpu.matmul %4, %5, %cst {dimension_numbers = #tpu.dot_dimension_numbers<[1], [0], [0], [1], [0, 0, 1, 1], [], []>} : vector<32x32xf32>, vector<32x96xf32>, vector<32x96xf32> -> vector<32x96xf32>
    %7 = arith.addf %3, %6 : vector<32x96xf32>
    %c0_6 = arith.constant 0 : index
    %c0_7 = arith.constant 0 : index
    %8 = vector.load %arg7[%c0_6, %c0_7] : memref<32x96xf32, #tpu.memory_space<vmem>>, vector<32x96xf32>
    tpu.vector_store %arg7[%c0_6, %c0_7], %7 {strides = array<i32>} : memref<32x96xf32, #tpu.memory_space<vmem>>, vector<32x96xf32>,
    %c0_i32_8 = arith.constant 0 : i32
    %9 = arith.cmpi eq, %arg2, %c0_i32_8 : i32
    %10 = arith.extui %9 : i1 to i32
    %c0_i32_9 = arith.constant 0 : i32
    %11 = arith.cmpi ne, %10, %c0_i32_9 : i32
    scf.if %11 {
      %c0_10 = arith.constant 0 : index
      %c0_11 = arith.constant 0 : index
      %12 = vector.load %arg7[%c0_10, %c0_11] : memref<32x96xf32, #tpu.memory_space<vmem>>, vector<32x96xf32>
      %c0_12 = arith.constant 0 : index
      %c0_13 = arith.constant 0 : index
      %13 = vector.load %arg5[%c0_12, %c0_13] : memref<1x96xf32, #tpu.memory_space<vmem>>, vector<1x96xf32>
      %14 = vector.broadcast %13 : vector<1x96xf32> to vector<32x96xf32>
      %15 = arith.addf %12, %14 : vector<32x96xf32>
      %c0_14 = arith.constant 0 : index
      %c0_15 = arith.constant 0 : index
      %16 = vector.load %arg6[%c0_14, %c0_15] : memref<32x96xf32, #tpu.memory_space<vmem>>, vector<32x96xf32>
      tpu.vector_store %arg6[%c0_14, %c0_15], %15 {strides = array<i32>} : memref<32x96xf32, #tpu.memory_space<vmem>>, vector<32x96xf32>,
    } else {
    }
    return
  }
  func.func @transform_0(%arg0: i32, %arg1: i32, %arg2: i32) -> (i32, i32) {
    %c0_i32 = arith.constant 0 : i32
    return %arg0, %arg2 : i32, i32
  }
  func.func @transform_1(%arg0: i32, %arg1: i32, %arg2: i32) -> (i32, i32) {
    %c0_i32 = arith.constant 0 : i32
    return %arg2, %arg1 : i32, i32
  }
  func.func @transform_2(%arg0: i32, %arg1: i32, %arg2: i32) -> (i32, i32) {
    %c0_i32 = arith.constant 0 : i32
    %c0_i32_0 = arith.constant 0 : i32
    return %c0_i32, %arg1 : i32, i32
  }
  func.func @transform_3(%arg0: i32, %arg1: i32, %arg2: i32) -> (i32, i32) {
    %c0_i32 = arith.constant 0 : i32
    return %arg0, %arg1 : i32, i32
  }
}

</mosaic_0001>

<llo_original>
// kernel: tpu_custom_call.1
$region0: #{tpu_custom_call.1}
  #allocation0 [shape = 'u32[]', space=smem, size = 0x4, offset = 0x4, fixed_abs, tag = 'smem constant byte address 0x4 - core index']
  #allocation1 [shape = 'u32[144,128]{1,0:T(1,128)}', space=vmem, size = 0x12000, scoped, tag = 'internal scratch']
  #allocation2 [shape = 'f32[32,96]{1,0:T(8,128)}', space=vmem, size = 0x4000, scoped, tag = 'scratch operand']
  %s0 = inlined_call_operand.hbm [shape: f32[32,32], index: 0, kind: input, shape index: {}]
  %s1 = inlined_call_operand.hbm [shape: f32[32,96], index: 1, kind: input, shape index: {}]
  %s2 = inlined_call_operand.vmem [shape: f32[1,96], index: 2, kind: input, shape index: {}]
  %s3 = inlined_call_operand.hbm [shape: f32[32,96], index: 3, kind: output, shape index: {}]
  %s4 = sld [smem:[#allocation0]]
  $region38: #{tpu_custom_call.1} parent=0
    _
  %s6 = ssub.s32 1, %s4
  %s7 = scalar_select 0, %s6, %s4
  $region1: #{tpu_custom_call.1} parent=0
    #allocation3 [shape = 'u8[16384]{0}', space=vmem, size = 0x4000, scoped, tag = 'input window, operand 0, single buffered']
    #allocation4 [shape = 's32[1]{0}', space=sflag, size = 0x4, scoped, tag = 'scoped memory for tpu_custom_call.1']
    #allocation5 [shape = 's32[1]{0}', space=sflag, size = 0x4, scoped, tag = 'scoped memory for tpu_custom_call.1']
    #allocation6 [shape = 'u8[16384]{0}', space=vmem, size = 0x4000, scoped, tag = 'input window, operand 1, single buffered']
    #allocation7 [shape = 's32[1]{0}', space=sflag, size = 0x4, scoped, tag = 'scoped memory for tpu_custom_call.1']
    #allocation8 [shape = 'u8[16384]{0}', space=vmem, size = 0x4000, scoped, tag = 'output window, operand 0, single buffered']
    %8 = vsyncpa [#allocation4], 0
    %9 = vsyncpa [#allocation7], 0
    %10 = vsyncpa [#allocation5], 0
    // Predicated region
    $region2: #{tpu_custom_call.1} parent=1 // pred_check
      _
    $region3: #{tpu_custom_call.1} parent=1 // pred_check_branch
      %12 = sbr.rel (0) target = $region5
    $region4: #{tpu_custom_call.1} parent=1 // pred_region
      %s14 = ssub.s32 512, 512
      %15 = vsyncadd [#allocation4], %s14
      %s16 = sshll.u32 [#allocation3], 4
      %s17 = int_to_ptr.vmem [resolvable:$true] %s16
      %22 = dma.hbm_to_vmem [thread:$0]  %s0, 512, %s17, [#allocation4], 128, 128, 8
    $region5: #{tpu_custom_call.1} parent=1 // pred_fallthru
      _
    // Predicated region
    $region6: #{tpu_custom_call.1} parent=1 // pred_check
      _
    $region7: #{tpu_custom_call.1} parent=1 // pred_check_branch
      %24 = sbr.rel (0) target = $region9
    $region8: #{tpu_custom_call.1} parent=1 // pred_region
      %s26 = ssub.s32 512, 512
      %27 = vsyncadd [#allocation7], %s26
      %s28 = sshll.u32 [#allocation6], 4
      %s29 = int_to_ptr.vmem [resolvable:$true] %s28
      %34 = dma.hbm_to_vmem [thread:$0]  %s1, 512, %s29, [#allocation7], 128, 128, 8
    $region9: #{tpu_custom_call.1} parent=1 // pred_fallthru
      _
    // Predicated region
    $region10: #{tpu_custom_call.1} parent=1 // pred_check
      _
    $region11: #{tpu_custom_call.1} parent=1 // pred_check_branch
      %36 = sbr.rel (0) target = $region13
    $region12: #{tpu_custom_call.1} parent=1 // pred_region
      _
    $region13: #{tpu_custom_call.1} parent=1 // pred_fallthru
      _
    // Predicated region
    $region14: #{tpu_custom_call.1} parent=1 // pred_check
      _
    $region15: #{tpu_custom_call.1} parent=1 // pred_check_branch
      %38 = sbr.rel (0) target = $region17
    $region16: #{tpu_custom_call.1} parent=1 // pred_region
      %39 = dma.done [#allocation4], 512
    $region17: #{tpu_custom_call.1} parent=1 // pred_fallthru
      _
    // Predicated region
    $region18: #{tpu_custom_call.1} parent=1 // pred_check
      _
    $region19: #{tpu_custom_call.1} parent=1 // pred_check_branch
      %41 = sbr.rel (0) target = $region21
    $region20: #{tpu_custom_call.1} parent=1 // pred_region
      %42 = dma.done [#allocation7], 512
    $region21: #{tpu_custom_call.1} parent=1 // pred_fallthru
      _
    %p43 = scmp.eq.s32.totalorder 0, 0
    // Predicated region
    $region22: #{tpu_custom_call.1} parent=1 // pred_check
      %p44 = pneg %p43
    $region23: #{tpu_custom_call.1} parent=1 // pred_check_branch
      %46 = sbr.rel (%p44) target = $region25
    $region24: #{tpu_custom_call.1} parent=1 // pred_region
      %vm47 = vcmask 785408
      %48 = vst.msk [vmem:[#allocation2] sm:$0xff] %vm47, 0.0
      %49 = vst.msk [vmem:[#allocation2 + $0x8] sm:$0xff] %vm47, 0.0
      %50 = vst.msk [vmem:[#allocation2 + $0x10] sm:$0xff] %vm47, 0.0
      %51 = vst.msk [vmem:[#allocation2 + $0x18] sm:$0xff] %vm47, 0.0
    $region25: #{tpu_custom_call.1} parent=1 // pred_fallthru
      _
    %v52 = vld [vmem:[#allocation2] sm:$0xff]
    %v53 = vld [vmem:[#allocation2 + $0x8] sm:$0xff]
    %v54 = vld [vmem:[#allocation2 + $0x10] sm:$0xff]
    %v55 = vld [vmem:[#allocation2 + $0x18] sm:$0xff]
    %v56 = vld [vmem:[#allocation3] sm:$0xff]
    %v57 = vld [vmem:[#allocation3 + $0x8] sm:$0xff]
    %v58 = vld [vmem:[#allocation3 + $0x10] sm:$0xff]
    %v59 = vld [vmem:[#allocation3 + $0x18] sm:$0xff]
    %v60 = vld [vmem:[#allocation6] sm:$0xff]
    %v61 = vld [vmem:[#allocation6 + $0x8] sm:$0xff]
    %v62 = vld [vmem:[#allocation6 + $0x10] sm:$0xff]
    %v63 = vld [vmem:[#allocation6 + $0x18] sm:$0xff]
    %vm64 = vcmask 261120
    %v66 = vsel %vm64, %v56, 0
    %v69 = vsel %vm64, %v57, 0
    %v72 = vsel %vm64, %v58, 0
    %v75 = vsel %vm64, %v59, 0
    %77 = vmatprep.subr.mxu0 0.0
    %78 = vmatpush1.msra.mxu0 %v60
    %79 = vmatprep.subr.mxu0 0.0
    %80 = vmatpush1.msra.mxu0 %v61
    %81 = vmatprep.subr.mxu0 0.0
    %82 = vmatpush1.msra.mxu0 %v62
    %83 = vmatprep.subr.mxu0 0.0
    %84 = vmatpush1.msra.mxu0 %v63
    %85 = vmatprep.subr.mxu0 0.0
    %86 = vmatpush1.msra.mxu0 0.0
    %87 = vmatprep.subr.mxu0 0.0
    %88 = vmatpush1.msra.mxu0 0.0
    %89 = vmatprep.subr.mxu0 0.0
    %90 = vmatpush1.msra.mxu0 0.0
    %91 = vmatprep.subr.mxu0 0.0
    %92 = vmatpush1.msra.mxu0 0.0
    %93 = vmatprep.subr.mxu0 0.0
    %94 = vmatpush1.msra.mxu0 0.0
    %95 = vmatprep.subr.mxu0 0.0
    %96 = vmatpush1.msra.mxu0 0.0
    %97 = vmatprep.subr.mxu0 0.0
    %98 = vmatpush1.msra.mxu0 0.0
    %99 = vmatprep.subr.mxu0 0.0
    %100 = vmatpush1.msra.mxu0 0.0
    %101 = vmatprep.subr.mxu0 0.0
    %102 = vmatpush1.msra.mxu0 0.0
    %103 = vmatprep.subr.mxu0 0.0
    %104 = vmatpush1.msra.mxu0 0.0
    %105 = vmatprep.subr.mxu0 0.0
    %106 = vmatpush1.msra.mxu0 0.0
    %107 = vmatprep.subr.mxu0 0.0
    %108 = vmatpush1.msra.mxu0 0.0
    %109 = vmatprep.subr.mxu0 0.0
    %110 = vmatpush1.msra.mxu0 0.0
    %111 = vmatprep.subr.mxu0 0.0
    %112 = vmatpush1.msra.mxu0 0.0
    %113 = vmatprep.subr.mxu0 0.0
    %114 = vmatpush1.msra.mxu0 0.0
    %115 = vmatprep.subr.mxu0 0.0
    %116 = vmatpush1.msra.mxu0 0.0
    %117 = vmatprep.subr.mxu0 0.0
    %118 = vmatpush1.msra.mxu0 0.0
    %119 = vmatprep.subr.mxu0 0.0
    %120 = vmatpush1.msra.mxu0 0.0
    %121 = vmatprep.subr.mxu0 0.0
    %122 = vmatpush1.msra.mxu0 0.0
    %123 = vmatprep.subr.mxu0 0.0
    %124 = vmatpush1.msra.mxu0 0.0
    %125 = vmatprep.subr.mxu0 0.0
    %126 = vmatpush1.msra.mxu0 0.0
    %127 = vmatprep.subr.mxu0 0.0
    %128 = vmatpush1.msra.mxu0 0.0
    %129 = vmatprep.subr.mxu0 0.0
    %130 = vmatpush1.msra.mxu0 0.0
    %131 = vmatprep.subr.mxu0 0.0
    %132 = vmatpush1.msra.mxu0 0.0
    %133 = vmatprep.subr.mxu0 0.0
    %134 = vmatpush1.msra.mxu0 0.0
    %135 = vmatprep.subr.mxu0 0.0
    %136 = vmatpush1.msra.mxu0 0.0
    %137 = vmatprep.subr.mxu0 0.0
    %138 = vmatpush1.msra.mxu0 0.0
    %139 = vmatprep.subr.mxu0 0.0
    %140 = vmatpush1.msra.mxu0 0.0
    %141 = vmatprep.mubr.f32.mxu0 0.0
    %142 = vmatmul.mubr.f32.gmra.mrb[0].mxu0 %v66
    %v143 = vpop.f32.mrb[0].mxu0
    %v144 = vadd.f32 0.0, %v143
    %v145 = vpop.f32.mrb[0].mxu0
    %146 = vmatprep.mubr.f32.mxu0 0.0
    %147 = vmatmul.mubr.f32.gmra.mrb[0].mxu0 %v69
    %v148 = vpop.f32.mrb[0].mxu0
    %v149 = vadd.f32 0.0, %v148
    %v150 = vpop.f32.mrb[0].mxu0
    %151 = vmatprep.mubr.f32.mxu0 0.0
    %152 = vmatmul.mubr.f32.gmra.mrb[0].mxu0 %v72
    %v153 = vpop.f32.mrb[0].mxu0
    %v154 = vadd.f32 0.0, %v153
    %v155 = vpop.f32.mrb[0].mxu0
    %156 = vmatprep.mubr.f32.mxu0 0.0
    %157 = vmatmul.mubr.f32.gmra.mrb[0].mxu0 %v75
    %v158 = vpop.f32.mrb[0].mxu0
    %v159 = vadd.f32 0.0, %v158
    %v160 = vpop.f32.mrb[0].mxu0
    %161 = vdwg.mxu0
    %v162 = vadd.f32 %v52, %v144
    %v163 = vadd.f32 %v53, %v149
    %v164 = vadd.f32 %v54, %v154
    %v165 = vadd.f32 %v55, %v159
    %vm166 = vcmask 785408
    %167 = vst.msk [vmem:[#allocation2] sm:$0xff] %vm166, %v162
    %168 = vst.msk [vmem:[#allocation2 + $0x8] sm:$0xff] %vm166, %v163
    %169 = vst.msk [vmem:[#allocation2 + $0x10] sm:$0xff] %vm166, %v164
    %170 = vst.msk [vmem:[#allocation2 + $0x18] sm:$0xff] %vm166, %v165
    // Predicated region
    $region26: #{tpu_custom_call.1} parent=1 // pred_check
      %p171 = pneg %p43
    $region27: #{tpu_custom_call.1} parent=1 // pred_check_branch
      %173 = sbr.rel (%p171) target = $region29
    $region28: #{tpu_custom_call.1} parent=1 // pred_region
      %v174 = vld [vmem:[#allocation2] sm:$0xff]
      %v175 = vld [vmem:[#allocation2 + $0x8] sm:$0xff]
      %v176 = vld [vmem:[#allocation2 + $0x10] sm:$0xff]
      %v177 = vld [vmem:[#allocation2 + $0x18] sm:$0xff]
      %v178 = vld [vmem:[%s2] sm:$0x1]
      %v180 = vlaneseq
      %v181 = vshrl.u32 %v180, 7
      %v182 = vsub.s32 0, %v181
      %v183 = vrot.slane %v178, %v182
      %v185 = vadd.f32 %v174, %v183
      %v186 = vadd.f32 %v175, %v183
      %v187 = vadd.f32 %v176, %v183
      %v188 = vadd.f32 %v177, %v183
      %189 = vst.msk [vmem:[#allocation8] sm:$0xff] %vm166, %v185
      %190 = vst.msk [vmem:[#allocation8 + $0x8] sm:$0xff] %vm166, %v186
      %191 = vst.msk [vmem:[#allocation8 + $0x10] sm:$0xff] %vm166, %v187
      %192 = vst.msk [vmem:[#allocation8 + $0x18] sm:$0xff] %vm166, %v188
    $region29: #{tpu_custom_call.1} parent=1 // pred_fallthru
      _
    // Predicated region
    $region30: #{tpu_custom_call.1} parent=1 // pred_check
      _
    $region31: #{tpu_custom_call.1} parent=1 // pred_check_branch
      %194 = sbr.rel (0) target = $region33
    $region32: #{tpu_custom_call.1} parent=1 // pred_region
      %s196 = ssub.s32 512, 512
      %197 = vsyncadd [#allocation5], %s196
      %s198 = sshll.u32 [#allocation8], 4
      %s199 = int_to_ptr.vmem [resolvable:$true] %s198
      %204 = dma.vmem_to_hbm [thread:$0]  %s199, 512, %s3, [#allocation5], 128, 128, 8
    $region33: #{tpu_custom_call.1} parent=1 // pred_fallthru
      _
    // Predicated region
    $region34: #{tpu_custom_call.1} parent=1 // pred_check
      _
    $region35: #{tpu_custom_call.1} parent=1 // pred_check_branch
      %206 = sbr.rel (0) target = $region37
    $region36: #{tpu_custom_call.1} parent=1 // pred_region
      %207 = dma.done [#allocation5], 512
    $region37: #{tpu_custom_call.1} parent=1 // pred_fallthru
      _
    %208 = vsyncpa [#allocation4], 1
    %209 = vsyncpa [#allocation7], 1
    %210 = vsyncpa [#allocation5], 1

</llo_original>
